<compile_context>
chip_gen: v5e
topology: v5e:2x2
jax: 0.10.0
libtpu: 0.0.40
codegen_flags: <defaults>
</compile_context>

<pallas_src>
import functools
import itertools

import numpy as np
import jax
import jax.numpy as jnp
from jax import lax
from jax.experimental import pallas as pl
from jax.experimental.pallas import tpu as pltpu


# ---------------------------------------------------------------------------
# Kernel 1: fused query projection -> head-blocked sample coords + attention.
# ---------------------------------------------------------------------------
def _qproj_kernel(q_ref, ref_ref, w_ref, b_ref, sel_ref,
                  ox_ref, oy_ref, oz_ref, oa_ref, *, LP):
    f32 = jnp.float32
    # (Lq, 4*LP) = [ix | iy | iz | logits] for this (batch, head) pair.
    t = (jnp.dot(q_ref[...], w_ref[...], preferred_element_type=f32)
         + jnp.dot(ref_ref[...], sel_ref[...], preferred_element_type=f32)
         + b_ref[...])
    ox_ref[...] = t[:, 0 * LP:1 * LP]
    oy_ref[...] = t[:, 1 * LP:2 * LP]
    oz_ref[...] = t[:, 2 * LP:3 * LP]
    # exact per-head softmax over the L*P samples of this head
    lg = t[:, 3 * LP:4 * LP]
    e = jnp.exp(lg - jnp.max(lg, axis=-1, keepdims=True))
    s = jnp.sum(e, axis=-1, keepdims=True)
    r = pl.reciprocal(s, approx=True)        # EUP slot
    r = r * (2.0 - s * r)                    # one Newton step -> full f32 accuracy
    oa_ref[...] = e * r


def fused_query_proj(query, ref2d, w_head, b_head, selref):
    N, Lq, dm = query.shape
    M, _, W4 = w_head.shape
    LP = W4 // 4
    r3 = ref2d.shape[-1]
    kern = functools.partial(_qproj_kernel, LP=LP)
    out_sds = jax.ShapeDtypeStruct((N, M * Lq, LP), jnp.float32)
    return pl.pallas_call(
        kern,
        out_shape=(out_sds,) * 4,
        grid=(N, M),
        in_specs=[
            pl.BlockSpec((None, Lq, dm), lambda n, m: (n, 0, 0)),   # query (reused over m)
            pl.BlockSpec((None, Lq, r3), lambda n, m: (n, 0, 0)),   # reference points
            pl.BlockSpec((None, dm, W4), lambda n, m: (m, 0, 0)),   # per-head weights
            pl.BlockSpec((None, 1, W4), lambda n, m: (m, 0, 0)),    # per-head bias
            pl.BlockSpec((r3, W4), lambda n, m: (0, 0)),            # ref-point selector
        ],
        out_specs=tuple(pl.BlockSpec((None, Lq, LP), lambda n, m: (n, m, 0))
                        for _ in range(4)),
        # heads stay innermost/sequential so the query block is fetched once per n;
        # the batch axis is parallel for v7x's two TensorCores.
        compiler_params=pltpu.CompilerParams(
            dimension_semantics=("parallel", "arbitrary")),
    )(query, ref2d, w_head, b_head, selref)


# ---------------------------------------------------------------------------
# Kernel 2: core ms_deform_attn (one batch element per grid step).
# ---------------------------------------------------------------------------
def _msda_core_kernel(x_ref, mask_ref, ix_ref, iy_ref, iz_ref, at_ref,
                      wv_ref, bv_ref, wo_ref, bo_ref, bm_ref, o_ref, *,
                      spatial_shapes, level_starts, M, L, P, C):
    f32 = jnp.float32
    MLq, LP = at_ref.shape
    Lq = MLq // M
    MC = M * C

    # ---- fused value projection + padding mask (MXU) ----------------------
    value = jnp.dot(x_ref[...], wv_ref[...], preferred_element_type=f32) + bv_ref[...]
    value = jnp.where(mask_ref[...] > 0.5, value, 0.0)        # (Len_in, M*C)

    # head-blocked sample coordinates / attention: rows = (head, query)
    ix = ix_ref[...]                                          # (M*Lq, L*P)
    iy = iy_ref[...]
    iz = iz_ref[...]
    at = at_ref[...]

    racc = jnp.zeros((MLq, MC), f32)
    for l, (H, W, D) in enumerate(spatial_shapes):
        s0 = level_starts[l]
        Sl = H * W * D
        cs = slice(l * P, (l + 1) * P)                        # level-l columns (contiguous)
        lx, ly, lz, la = ix[:, cs], iy[:, cs], iz[:, cs], at[:, cs]
        # only floor/frac/attn stay live across the corner loop (low vreg pressure)
        x0 = jnp.floor(lx); dx = lx - x0
        y0 = jnp.floor(ly); dy = ly - y0
        z0 = jnp.floor(lz); dz = lz - z0

        iota_s = lax.broadcasted_iota(jnp.int32, (MLq, Sl), 1)
        a_all = jnp.zeros((MLq, Sl), f32)                     # head-blocked one-hot weights
        for cz in (0, 1):
            zc = z0 + float(cz)
            wz = dz if cz else 1.0 - dz
            zok = (zc >= 0.0) & (zc <= float(H - 1))
            for cy in (0, 1):
                yc = y0 + float(cy)
                wzy = wz * (dy if cy else 1.0 - dy)
                zyok = zok & (yc >= 0.0) & (yc <= float(W - 1))
                base = zc * float(W * D) + yc * float(D)
                for cx in (0, 1):
                    xc = x0 + float(cx)
                    wgt = la * (wzy * (dx if cx else 1.0 - dx))
                    # padding_mode='zeros': out-of-bounds corners carry zero weight
                    wgt = jnp.where(zyok & (xc >= 0.0) & (xc <= float(D - 1)), wgt, 0.0)
                    flat = (base + xc).astype(jnp.int32)      # exact small ints
                    for p in range(P):
                        a_all = a_all + jnp.where(flat[:, p:p + 1] == iota_s,
                                                  wgt[:, p:p + 1], 0.0)
        # one batched (M*Lq, Sl) @ (Sl, M*C) matmul per level (level start / size
        # are multiples of 8 -> tile-aligned row slice of value)
        racc = racc + jnp.dot(a_all, value[s0:s0 + Sl, :], preferred_element_type=f32)

    # select each head's C output columns from its own row block
    rsel = racc * bm_ref[...]                                 # hoisted constant block mask
    out = rsel[0:Lq, :]
    for m in range(1, M):
        out = out + rsel[m * Lq:(m + 1) * Lq, :]

    # ---- fused output projection -------------------------------------------
    o_ref[...] = jnp.dot(out, wo_ref[...], preferred_element_type=f32) + bo_ref[...]


def msda_core(x, mask_keep, ix, iy, iz, attn, w_val, b_val, w_out, b_out, bmask, *,
              spatial_shapes, level_starts, M, L, P, C):
    N, Len_in, dm = x.shape
    MLq, LP = ix.shape[1], ix.shape[2]
    Lq = MLq // M
    Dv = w_val.shape[1]
    d_out = w_out.shape[1]
    kern = functools.partial(_msda_core_kernel, spatial_shapes=spatial_shapes,
                             level_starts=level_starts, M=M, L=L, P=P, C=C)
    return pl.pallas_call(
        kern,
        out_shape=jax.ShapeDtypeStruct((N, Lq, d_out), jnp.float32),
        grid=(N,),
        in_specs=[
            pl.BlockSpec((None, Len_in, dm), lambda n: (n, 0, 0)),
            pl.BlockSpec((None, Len_in, 1), lambda n: (n, 0, 0)),
            pl.BlockSpec((None, MLq, LP), lambda n: (n, 0, 0)),
            pl.BlockSpec((None, MLq, LP), lambda n: (n, 0, 0)),
            pl.BlockSpec((None, MLq, LP), lambda n: (n, 0, 0)),
            pl.BlockSpec((None, MLq, LP), lambda n: (n, 0, 0)),
            pl.BlockSpec((dm, Dv), lambda n: (0, 0)),
            pl.BlockSpec((1, Dv), lambda n: (0, 0)),
            pl.BlockSpec((Dv, d_out), lambda n: (0, 0)),
            pl.BlockSpec((1, d_out), lambda n: (0, 0)),
            pl.BlockSpec((MLq, Dv), lambda n: (0, 0)),
        ],
        out_specs=pl.BlockSpec((None, Lq, d_out), lambda n: (n, 0, 0)),
        # batch elements are independent -> v7x's two TensorCores split them
        compiler_params=pltpu.CompilerParams(dimension_semantics=("parallel",)),
    )(x, mask_keep, ix, iy, iz, attn, w_val, b_val, w_out, b_out, bmask)


# ---------------------------------------------------------------------------
# MSDeformAttn module (parameters initialized exactly as _reset_parameters)
# ---------------------------------------------------------------------------
class MSDeformAttnPallas:
    def __init__(self, d_model=32, n_levels=2, n_heads=8, n_points=2, ratio=1.0, key=None):
        if d_model % n_heads != 0:
            raise ValueError("d_model must be divisible by n_heads")
        assert n_heads == 8, "3D MSDeformAttn only supports 8 heads"
        self.d_model = d_model
        self.n_levels = n_levels
        self.n_heads = n_heads
        self.n_points = n_points
        self.ratio = ratio
        self.d_v = int(d_model * ratio)
        assert self.d_v % n_heads == 0
        self.c_per_head = self.d_v // n_heads

        k1, k2 = jax.random.split(key, 2)

        def xavier(k, fan_in, fan_out):
            a = float(np.sqrt(6.0 / (fan_in + fan_out)))
            return jax.random.uniform(k, (fan_in, fan_out), jnp.float32, -a, a)

        # sampling_offsets: zero weight, structured bias (grid_init)
        self.w_off = jnp.zeros((d_model, n_heads * n_levels * n_points * 3), jnp.float32)
        base = np.array(list(itertools.product([-1, 1], [-1, 1], [-1, 1])), dtype=np.float32)
        base = base / np.abs(base).max(axis=-1, keepdims=True)
        grid_bias = np.tile(base.reshape(n_heads, 1, 1, 3), (1, n_levels, n_points, 1))
        for i in range(n_points):
            grid_bias[:, :, i, :] *= (i + 1)
        self.b_off = jnp.asarray(grid_bias.reshape(-1))

        # attention_weights: zeros
        self.w_attn = jnp.zeros((d_model, n_heads * n_levels * n_points), jnp.float32)
        self.b_attn = jnp.zeros((n_heads * n_levels * n_points,), jnp.float32)

        # value_proj / output_proj: xavier uniform weight, zero bias (stored (in, out))
        self.w_val = xavier(k1, d_model, self.d_v)
        self.b_val = jnp.zeros((self.d_v,), jnp.float32)
        self.w_out = xavier(k2, self.d_v, d_model)
        self.b_out = jnp.zeros((d_model,), jnp.float32)

    def __call__(self, query, reference_points, input_flatten, input_spatial_shapes,
                 input_level_start_index, input_padding_mask=None):
        N, Lq, _ = query.shape
        _, Len_in, _ = input_flatten.shape
        shapes = tuple(tuple(int(v) for v in s) for s in np.asarray(input_spatial_shapes))
        starts = tuple(int(v) for v in np.asarray(input_level_start_index))
        if reference_points.shape[-1] != 3:
            raise ValueError("Last dim of reference_points must be 3")
        M, L, P, C = self.n_heads, self.n_levels, self.n_points, self.c_per_head
        LP = L * P
        dm = self.d_model
        assert sum(h * w * d for h, w, d in shapes) == Len_in
        # tile-alignment assumptions for the sublane row slices inside the kernels
        assert Lq % 8 == 0, "Len_q must be a multiple of 8 (pad queries)"
        for (h, w, d), s0 in zip(shapes, starts):
            assert (h * w * d) % 8 == 0 and s0 % 8 == 0, \
                "per-level size / start offset must be multiples of 8 (pad levels)"

        # ---- fold offset normalizer (W,H,D), grid_sample scale (D,W,H) and the
        #      -0.5 align_corners shift into per-head projection weights ---------
        shp = np.asarray(shapes, np.float64)                    # (L, 3) = (H, W, D)
        H_l, W_l, D_l = shp[:, 0], shp[:, 1], shp[:, 2]
        size_c = np.stack([D_l, W_l, H_l], 0)                   # grid x->D, y->W, z->H
        norm_c = np.stack([W_l, H_l, D_l], 0)                   # offset normalizer
        scale = size_c / norm_c                                 # (3, L)

        w_off = np.asarray(self.w_off, np.float64).reshape(dm, M, L, P, 3)
        b_off = np.asarray(self.b_off, np.float64).reshape(M, L, P, 3)
        w_att = np.asarray(self.w_attn, np.float64).reshape(dm, M, L, P)
        b_att = np.asarray(self.b_attn, np.float64).reshape(M, L, P)

        w_coord = np.einsum('dmlpc,cl->mdclp', w_off, scale).reshape(M, dm, 3 * LP)
        b_coord = (np.einsum('mlpc,cl->mclp', b_off, scale) - 0.5).reshape(M, 1, 3 * LP)
        w_head = np.concatenate(
            [w_coord, np.transpose(w_att, (1, 0, 2, 3)).reshape(M, dm, LP)], axis=-1)
        b_head = np.concatenate([b_coord, b_att.reshape(M, 1, LP)], axis=-1)

        # reference-point selector: ref2d (Lq, 3L) @ selref (3L, 4LP) broadcasts the
        # per-level reference points to every (coord, level, point) column, scaled.
        selref = np.zeros((3 * L, 4 * LP), np.float64)
        for l in range(L):
            for c in range(3):
                selref[l * 3 + c, c * LP + l * P: c * LP + l * P + P] = size_c[c, l]

        # head-block output mask (hoisted constant)
        bmask = np.kron(np.eye(M, dtype=np.float32), np.ones((Lq, C), np.float32))

        ref2d = reference_points.reshape(N, Lq, L * 3).astype(jnp.float32)

        # --- kernel 1: head-blocked sample coords + per-head softmaxed attention --
        ix, iy, iz, attn = fused_query_proj(
            query.astype(jnp.float32), ref2d,
            jnp.asarray(w_head, jnp.float32), jnp.asarray(b_head, jnp.float32),
            jnp.asarray(selref, jnp.float32))

        if input_padding_mask is not None:
            mask_keep = 1.0 - input_padding_mask.astype(jnp.float32)
        else:
            mask_keep = jnp.ones((N, Len_in), jnp.float32)
        mask_keep = mask_keep.reshape(N, Len_in, 1)
        # TODO(synk): at production Len_in store the mask lane-dense / packed.

        # --- kernel 2: value_proj + gather + weighted reduction + output_proj ----
        return msda_core(
            input_flatten.astype(jnp.float32), mask_keep, ix, iy, iz, attn,
            self.w_val, self.b_val.reshape(1, -1),
            self.w_out, self.b_out.reshape(1, -1),
            jnp.asarray(bmask),
            spatial_shapes=shapes, level_starts=starts, M=M, L=L, P=P, C=C)


# ---------------------------------------------------------------------------
# Pure-JAX reference (same math, gather-based) for validation
# ---------------------------------------------------------------------------
def _ref_core(value, spatial_shapes, level_starts, loc, attn):
    N, S, M, C = value.shape
    Lq, L, P = loc.shape[1], loc.shape[3], loc.shape[4]
    grids = 2.0 * loc - 1.0
    out = jnp.zeros((N, Lq, M, C), jnp.float32)
    n_idx = jnp.arange(N)[:, None, None, None]
    m_idx = jnp.arange(M)[None, None, :, None]
    for l, (H, W, D) in enumerate(spatial_shapes):
        s0 = level_starts[l]; Sl = H * W * D
        v_l = value[:, s0:s0 + Sl]                       # (N, Sl, M, C)
        g = grids[:, :, :, l]                            # (N, Lq, M, P, 3)
        ix = ((g[..., 0] + 1.0) * D - 1.0) / 2.0
        iy = ((g[..., 1] + 1.0) * W - 1.0) / 2.0
        iz = ((g[..., 2] + 1.0) * H - 1.0) / 2.0
        x0 = jnp.floor(ix); y0 = jnp.floor(iy); z0 = jnp.floor(iz)
        dx, dy, dz = ix - x0, iy - y0, iz - z0
        x0i, y0i, z0i = x0.astype(jnp.int32), y0.astype(jnp.int32), z0.astype(jnp.int32)
        samp = jnp.zeros((N, Lq, M, P, C), jnp.float32)
        for cz in (0, 1):
            for cy in (0, 1):
                for cx in (0, 1):
                    xi, yi, zi = x0i + cx, y0i + cy, z0i + cz
                    w = ((dz if cz else 1 - dz) * (dy if cy else 1 - dy)
                         * (dx if cx else 1 - dx))
                    inb = ((xi >= 0) & (xi < D) & (yi >= 0) & (yi < W)
                           & (zi >= 0) & (zi < H)).astype(jnp.float32)
                    flat = jnp.clip(zi * W * D + yi * D + xi, 0, Sl - 1)
                    gathered = v_l[n_idx, flat, m_idx]   # (N, Lq, M, P, C)
                    samp = samp + (w * inb)[..., None] * gathered
        out = out + jnp.sum(attn[:, :, :, l, :, None] * samp, axis=3)
    return out.reshape(N, Lq, M * C)


def ref_forward(mod, query, ref_pts, input_flatten, spatial_shapes, level_starts, padding_mask):
    N, Lq, _ = query.shape
    M, L, P, C = mod.n_heads, mod.n_levels, mod.n_points, mod.c_per_head
    value = input_flatten @ mod.w_val + mod.b_val
    if padding_mask is not None:
        value = jnp.where(padding_mask[..., None], 0.0, value)
    value = value.reshape(N, -1, M, C)
    off = (query @ mod.w_off + mod.b_off).reshape(N, Lq, M, L, P, 3)
    attn = jax.nn.softmax((query @ mod.w_attn + mod.b_attn).reshape(N, Lq, M, L * P), -1)
    attn = attn.reshape(N, Lq, M, L, P)
    shapes_f = jnp.asarray(spatial_shapes, jnp.float32)
    normalizer = jnp.stack([shapes_f[:, 1], shapes_f[:, 0], shapes_f[:, 2]], -1)
    loc = ref_pts[:, :, None, :, None, :] + off / normalizer[None, None, None, :, None, :]
    core = _ref_core(value, spatial_shapes, level_starts, loc, attn)
    return core @ mod.w_out + mod.b_out


# ---------------------------------------------------------------------------
if __name__ == "__main__":
    key = jax.random.PRNGKey(0)
    d_model, n_levels, n_heads, n_points, ratio = 32, 2, 8, 2, 1.0
    spatial_shapes = [(4, 4, 4), (2, 2, 2)]           # (H, W, D) per level
    level_starts = [0, 64]
    Len_in = sum(h * w * d for h, w, d in spatial_shapes)   # 72
    N, Lq = 2, 8

    k1, k2, k3, k4, k5, k6, k7 = jax.random.split(key, 7)
    query = jax.random.normal(k1, (N, Lq, d_model), jnp.float32)
    input_flatten = jax.random.normal(k2, (N, Len_in, d_model), jnp.float32)
    reference_points = jax.random.uniform(k3, (N, Lq, n_levels, 3), jnp.float32)
    padding_mask = jax.random.bernoulli(k5, 0.1, (N, Len_in))

    module = MSDeformAttnPallas(d_model, n_levels, n_heads, n_points, ratio, key=k4)

    # --- check 1: default (_reset_parameters) initialization -----------------
    out = module(query, reference_points, input_flatten, spatial_shapes,
                 level_starts, padding_mask)
    out = jax.block_until_ready(out)
    assert out.shape == (N, Lq, d_model)
    ref = ref_forward(module, query, reference_points, input_flatten,
                      spatial_shapes, level_starts, padding_mask)
    assert bool(jnp.allclose(out, ref, atol=1e-3, rtol=1e-3)), "mismatch vs reference (init params)"

    # --- check 2: randomized offset / attention weights (exercises the
    #     per-head softmax and data-dependent sampling paths) -----------------
    module.w_off = 0.05 * jax.random.normal(k6, module.w_off.shape, jnp.float32)
    module.w_attn = 0.5 * jax.random.normal(k7, module.w_attn.shape, jnp.float32)
    out2 = jax.block_until_ready(
        module(query, reference_points, input_flatten, spatial_shapes,
               level_starts, padding_mask))
    ref2 = ref_forward(module, query, reference_points, input_flatten,
                       spatial_shapes, level_starts, padding_mask)
    assert bool(jnp.allclose(out2, ref2, atol=1e-3, rtol=1e-3)), "mismatch vs reference (random params)"

    print("KERNEL_OK")
</pallas_src>

<mosaic_0001>
module attributes {stable_mosaic.version = 11 : i64} {
  func.func @_qproj_kernel(%arg0: i32, %arg1: i32, %arg2: memref<1x8x32xf32, #tpu.memory_space<vmem>>, %arg3: memref<1x8x6xf32, #tpu.memory_space<vmem>>, %arg4: memref<1x32x16xf32, #tpu.memory_space<vmem>>, %arg5: memref<1x1x16xf32, #tpu.memory_space<vmem>>, %arg6: memref<6x16xf32, #tpu.memory_space<vmem>>, %arg7: memref<1x8x4xf32, #tpu.memory_space<vmem>>, %arg8: memref<1x8x4xf32, #tpu.memory_space<vmem>>, %arg9: memref<1x8x4xf32, #tpu.memory_space<vmem>>, %arg10: memref<1x8x4xf32, #tpu.memory_space<vmem>>) attributes {dimension_semantics = [#tpu.dimension_semantics<parallel>, #tpu.dimension_semantics<arbitrary>], iteration_bounds = array<i64: 2, 8>, scalar_prefetch = 0 : i64, scratch_operands = 0 : i64, tpu.core_type = #tpu.core_type<tc>, window_params = [{transform_indices = @transform_0, window_bounds = array<i64: 1, 8, 32>}, {transform_indices = @transform_1, window_bounds = array<i64: 1, 8, 6>}, {transform_indices = @transform_2, window_bounds = array<i64: 1, 32, 16>}, {transform_indices = @transform_3, window_bounds = array<i64: 1, 1, 16>}, {pipeline_mode = #tpu.pipeline_mode<synchronous>, transform_indices = @transform_4, window_bounds = array<i64: 6, 16>}, {transform_indices = @transform_5, window_bounds = array<i64: 1, 8, 4>}, {transform_indices = @transform_6, window_bounds = array<i64: 1, 8, 4>}, {transform_indices = @transform_7, window_bounds = array<i64: 1, 8, 4>}, {transform_indices = @transform_8, window_bounds = array<i64: 1, 8, 4>}]} {
    %c0 = arith.constant 0 : index
    %c0_0 = arith.constant 0 : index
    %c0_1 = arith.constant 0 : index
    %0 = vector.load %arg2[%c0, %c0_0, %c0_1] : memref<1x8x32xf32, #tpu.memory_space<vmem>>, vector<1x8x32xf32>
    %1 = vector.shape_cast %0 : vector<1x8x32xf32> to vector<8x32xf32>
    %c0_2 = arith.constant 0 : index
    %c0_3 = arith.constant 0 : index
    %c0_4 = arith.constant 0 : index
    %2 = vector.load %arg4[%c0_2, %c0_3, %c0_4] : memref<1x32x16xf32, #tpu.memory_space<vmem>>, vector<1x32x16xf32>
    %3 = vector.shape_cast %2 : vector<1x32x16xf32> to vector<32x16xf32>
    %cst = arith.constant dense<0.000000e+00> : vector<8x16xf32>
    %4 = tpu.matmul %1, %3, %cst {dimension_numbers = #tpu.dot_dimension_numbers<[1], [0], [0], [1], [0, 0, 1, 1], [], []>} : vector<8x32xf32>, vector<32x16xf32>, vector<8x16xf32> -> vector<8x16xf32>
    %c0_5 = arith.constant 0 : index
    %c0_6 = arith.constant 0 : index
    %c0_7 = arith.constant 0 : index
    %5 = vector.load %arg3[%c0_5, %c0_6, %c0_7] : memref<1x8x6xf32, #tpu.memory_space<vmem>>, vector<1x8x6xf32>
    %6 = vector.shape_cast %5 : vector<1x8x6xf32> to vector<8x6xf32>
    %c0_8 = arith.constant 0 : index
    %c0_9 = arith.constant 0 : index
    %7 = vector.load %arg6[%c0_8, %c0_9] : memref<6x16xf32, #tpu.memory_space<vmem>>, vector<6x16xf32>
    %cst_10 = arith.constant dense<0.000000e+00> : vector<8x16xf32>
    %8 = tpu.matmul %6, %7, %cst_10 {dimension_numbers = #tpu.dot_dimension_numbers<[1], [0], [0], [1], [0, 0, 1, 1], [], []>} : vector<8x6xf32>, vector<6x16xf32>, vector<8x16xf32> -> vector<8x16xf32>
    %9 = arith.addf %4, %8 : vector<8x16xf32>
    %c0_11 = arith.constant 0 : index
    %c0_12 = arith.constant 0 : index
    %c0_13 = arith.constant 0 : index
    %10 = vector.load %arg5[%c0_11, %c0_12, %c0_13] : memref<1x1x16xf32, #tpu.memory_space<vmem>>, vector<1x1x16xf32>
    %11 = vector.shape_cast %10 : vector<1x1x16xf32> to vector<1x16xf32>
    %12 = vector.broadcast %11 : vector<1x16xf32> to vector<8x16xf32>
    %13 = arith.addf %9, %12 : vector<8x16xf32>
    %14 = vector.extract_strided_slice %13 {offsets = [0, 0], sizes = [8, 4], strides = [1, 1]} : vector<8x16xf32> to vector<8x4xf32>
    %c0_14 = arith.constant 0 : index
    %c0_15 = arith.constant 0 : index
    %c0_16 = arith.constant 0 : index
    %15 = vector.load %arg7[%c0_14, %c0_15, %c0_16] : memref<1x8x4xf32, #tpu.memory_space<vmem>>, vector<1x8x4xf32>
    %16 = vector.shape_cast %15 : vector<1x8x4xf32> to vector<8x4xf32>
    %17 = vector.shape_cast %14 : vector<8x4xf32> to vector<1x8x4xf32>
    tpu.vector_store %arg7[%c0_14, %c0_15, %c0_16], %17 {strides = array<i32>} : memref<1x8x4xf32, #tpu.memory_space<vmem>>, vector<1x8x4xf32>,
    %18 = vector.extract_strided_slice %13 {offsets = [0, 4], sizes = [8, 4], strides = [1, 1]} : vector<8x16xf32> to vector<8x4xf32>
    %c0_17 = arith.constant 0 : index
    %c0_18 = arith.constant 0 : index
    %c0_19 = arith.constant 0 : index
    %19 = vector.load %arg8[%c0_17, %c0_18, %c0_19] : memref<1x8x4xf32, #tpu.memory_space<vmem>>, vector<1x8x4xf32>
    %20 = vector.shape_cast %19 : vector<1x8x4xf32> to vector<8x4xf32>
    %21 = vector.shape_cast %18 : vector<8x4xf32> to vector<1x8x4xf32>
    tpu.vector_store %arg8[%c0_17, %c0_18, %c0_19], %21 {strides = array<i32>} : memref<1x8x4xf32, #tpu.memory_space<vmem>>, vector<1x8x4xf32>,
    %22 = vector.extract_strided_slice %13 {offsets = [0, 8], sizes = [8, 4], strides = [1, 1]} : vector<8x16xf32> to vector<8x4xf32>
    %c0_20 = arith.constant 0 : index
    %c0_21 = arith.constant 0 : index
    %c0_22 = arith.constant 0 : index
    %23 = vector.load %arg9[%c0_20, %c0_21, %c0_22] : memref<1x8x4xf32, #tpu.memory_space<vmem>>, vector<1x8x4xf32>
    %24 = vector.shape_cast %23 : vector<1x8x4xf32> to vector<8x4xf32>
    %25 = vector.shape_cast %22 : vector<8x4xf32> to vector<1x8x4xf32>
    tpu.vector_store %arg9[%c0_20, %c0_21, %c0_22], %25 {strides = array<i32>} : memref<1x8x4xf32, #tpu.memory_space<vmem>>, vector<1x8x4xf32>,
    %26 = vector.extract_strided_slice %13 {offsets = [0, 12], sizes = [8, 4], strides = [1, 1]} : vector<8x16xf32> to vector<8x4xf32>
    %cst_23 = arith.constant dense<0xFF800000> : vector<8xf32>
    %27 = vector.multi_reduction <maximumf>, %26, %cst_23 [1] : vector<8x4xf32> to vector<8xf32>
    %28 = vector.shape_cast %27 : vector<8xf32> to vector<8x1xf32>
    %29 = vector.broadcast %28 : vector<8x1xf32> to vector<8x4xf32>
    %30 = arith.subf %26, %29 : vector<8x4xf32>
    %31 = math.exp %30 : vector<8x4xf32>
    %cst_24 = arith.constant dense<0.000000e+00> : vector<8xf32>
    %32 = vector.multi_reduction <add>, %31, %cst_24 [1] : vector<8x4xf32> to vector<8xf32>
    %33 = vector.shape_cast %32 : vector<8xf32> to vector<8x1xf32>
    %34 = tpu.reciprocal %33 {approx = true} : vector<8x1xf32> -> vector<8x1xf32>
    %35 = arith.mulf %33, %34 : vector<8x1xf32>
    %cst_25 = arith.constant 2.000000e+00 : f32
    %36 = vector.broadcast %cst_25 : f32 to vector<8x1xf32>
    %37 = arith.subf %36, %35 : vector<8x1xf32>
    %38 = arith.mulf %34, %37 : vector<8x1xf32>
    %39 = vector.broadcast %38 : vector<8x1xf32> to vector<8x4xf32>
    %40 = arith.mulf %31, %39 : vector<8x4xf32>
    %c0_26 = arith.constant 0 : index
    %c0_27 = arith.constant 0 : index
    %c0_28 = arith.constant 0 : index
    %41 = vector.load %arg10[%c0_26, %c0_27, %c0_28] : memref<1x8x4xf32, #tpu.memory_space<vmem>>, vector<1x8x4xf32>
    %42 = vector.shape_cast %41 : vector<1x8x4xf32> to vector<8x4xf32>
    %43 = vector.shape_cast %40 : vector<8x4xf32> to vector<1x8x4xf32>
    tpu.vector_store %arg10[%c0_26, %c0_27, %c0_28], %43 {strides = array<i32>} : memref<1x8x4xf32, #tpu.memory_space<vmem>>, vector<1x8x4xf32>,
    return
  }
  func.func @transform_0(%arg0: i32, %arg1: i32) -> (i32, i32, i32) {
    %c0_i32 = arith.constant 0 : i32
    %c0_i32_0 = arith.constant 0 : i32
    %c0_i32_1 = arith.constant 0 : i32
    return %arg0, %c0_i32, %c0_i32_0 : i32, i32, i32
  }
  func.func @transform_1(%arg0: i32, %arg1: i32) -> (i32, i32, i32) {
    %c0_i32 = arith.constant 0 : i32
    %c0_i32_0 = arith.constant 0 : i32
    %c0_i32_1 = arith.constant 0 : i32
    return %arg0, %c0_i32, %c0_i32_0 : i32, i32, i32
  }
  func.func @transform_2(%arg0: i32, %arg1: i32) -> (i32, i32, i32) {
    %c0_i32 = arith.constant 0 : i32
    %c0_i32_0 = arith.constant 0 : i32
    %c0_i32_1 = arith.constant 0 : i32
    return %arg1, %c0_i32, %c0_i32_0 : i32, i32, i32
  }
  func.func @transform_3(%arg0: i32, %arg1: i32) -> (i32, i32, i32) {
    %c0_i32 = arith.constant 0 : i32
    %c0_i32_0 = arith.constant 0 : i32
    %c0_i32_1 = arith.constant 0 : i32
    return %arg1, %c0_i32, %c0_i32_0 : i32, i32, i32
  }
  func.func @transform_4(%arg0: i32, %arg1: i32) -> (i32, i32) {
    %c0_i32 = arith.constant 0 : i32
    %c0_i32_0 = arith.constant 0 : i32
    %c0_i32_1 = arith.constant 0 : i32
    return %c0_i32, %c0_i32_0 : i32, i32
  }
  func.func @transform_5(%arg0: i32, %arg1: i32) -> (i32, i32, i32) {
    %c0_i32 = arith.constant 0 : i32
    %c0_i32_0 = arith.constant 0 : i32
    return %arg0, %arg1, %c0_i32 : i32, i32, i32
  }
  func.func @transform_6(%arg0: i32, %arg1: i32) -> (i32, i32, i32) {
    %c0_i32 = arith.constant 0 : i32
    %c0_i32_0 = arith.constant 0 : i32
    return %arg0, %arg1, %c0_i32 : i32, i32, i32
  }
  func.func @transform_7(%arg0: i32, %arg1: i32) -> (i32, i32, i32) {
    %c0_i32 = arith.constant 0 : i32
    %c0_i32_0 = arith.constant 0 : i32
    return %arg0, %arg1, %c0_i32 : i32, i32, i32
  }
  func.func @transform_8(%arg0: i32, %arg1: i32) -> (i32, i32, i32) {
    %c0_i32 = arith.constant 0 : i32
    %c0_i32_0 = arith.constant 0 : i32
    return %arg0, %arg1, %c0_i32 : i32, i32, i32
  }
}

</mosaic_0001>

<llo_original>
// kernel: tpu_custom_call.1
$region0: #{tpu_custom_call.1}
  #allocation0 [shape = 'u32[]', space=smem, size = 0x4, offset = 0x4, fixed_abs, tag = 'smem constant byte address 0x4 - core index']
  #allocation1 [shape = 'u32[72,128]{1,0:T(1,128)}', space=vmem, size = 0x9000, scoped, tag = 'internal scratch']
  %s0 = inlined_call_operand.vmem [shape: f32[2,8,32], index: 0, kind: input, shape index: {}]
  %s1 = inlined_call_operand.vmem [shape: f32[2,8,6], index: 1, kind: input, shape index: {}]
  %s2 = inlined_call_operand.vmem [shape: f32[8,32,16], index: 2, kind: input, shape index: {}]
  %s3 = inlined_call_operand.vmem [shape: f32[8,1,16], index: 3, kind: input, shape index: {}]
  %s4 = inlined_call_operand.vmem [shape: f32[6,16], index: 4, kind: input, shape index: {}]
  %s5 = inlined_call_operand.vmem [shape: f32[2,64,4], index: 5, kind: output, shape index: {0}]
  %s6 = inlined_call_operand.vmem [shape: f32[2,64,4], index: 6, kind: output, shape index: {1}]
  %s7 = inlined_call_operand.vmem [shape: f32[2,64,4], index: 7, kind: output, shape index: {2}]
  %s8 = inlined_call_operand.vmem [shape: f32[2,64,4], index: 8, kind: output, shape index: {3}]
  %9 = xla_tuple %s5, %s6, %s7, %s8
  %s10 = sld [smem:[#allocation0]]
  $region77: #{tpu_custom_call.1} parent=0
    _
  %s12 = ssub.s32 1, %s10
  %s13 = scalar_select 0, %s12, %s10
  loop: start=0, step=1, limit=18
  $region2: #{tpu_custom_call.1} parent=0 // loop_pre_header
    _
  $region3: #{tpu_custom_call.1} parent=0 // loop_header
    %s15 = sphi 0, %s19
    %p16 = scmp.ge.s32.totalorder %s15, 18
    %s22 = sphi 0, %s34
    %s23 = sphi 0, %s30
    %s24 = sphi 0, %s22
    %s25 = sphi 0, %s23
    %s26 = sphi 0, %s24
    %s27 = sphi 0, %s25
    %s37 = sphi 0, %s39
    %s40 = sphi 0, %s37
    %s41 = sphi 0, %s40
    %s57 = sphi 0, %s41
    %s63 = sphi 0, %s65
    %s66 = sphi 0, %s63
    %s67 = sphi 0, %s66
    %s83 = sphi 0, %s67
    %s89 = sphi 0, %s91
    %s92 = sphi 0, %s89
    %s93 = sphi 0, %s92
    %s109 = sphi 0, %s93
    %s115 = sphi 0, %s117
    %s118 = sphi 0, %s115
    %s119 = sphi 0, %s118
    %s135 = sphi 0, %s119
    %s139 = sphi 0, %s139
    %s141 = sphi 0, %s139
    %s142 = sphi 0, %s141
    %s156 = sphi 0, %s142
    %s164 = sphi 0, %s166
    %s167 = sphi 0, %s164
    %s168 = sphi 0, %s167
    %s184 = sphi 0, %s168
    %s192 = sphi 0, %s194
    %s195 = sphi 0, %s192
    %s196 = sphi 0, %s195
    %s212 = sphi 0, %s196
    %s220 = sphi 0, %s222
    %s223 = sphi 0, %s220
    %s224 = sphi 0, %s223
    %s240 = sphi 0, %s224
    %s248 = sphi 0, %s250
    %s251 = sphi 0, %s248
    %s252 = sphi 0, %s251
    %s268 = sphi 0, %s252
  $region4: #{tpu_custom_call.1} parent=0 // loop_header_branch
    %18 = sbr.rel (%p16) target = $region8
  $region5: #{tpu_custom_call.1} parent=0 // loop_body
    %s20 = ssub.s32 %s15, 1
    %s21 = ssub.s32 %s15, 2
    %s28 = sadd.s32 1, %s23
    %p29 = scmp.ge.s32.totalorder %s28, 8
    %s30 = scalar_select %p29, 0, %s28
    %s31 = sadd.s32 1, %s22
    %s32 = scalar_select %p29, %s31, %s22
    %p33 = scmp.ge.s32.totalorder %s32, 2
    %s34 = scalar_select %p33, 0, %s32
    %s35 = ssub.s32 %s22, %s34
    %p36 = scmp.eq.s32.totalorder %s35, 0
    %s38 = sadd.s32 %s37, 1
    %s39 = scalar_select %p36, %s37, %s38
    %p42 = pneg %p36
    %p43 = scmp.eq.s32.totalorder %s15, 15
    %p44 = por %p42, %p43
    %p45 = scmp.ne.s32.totalorder %s37, %s40
    %p46 = scmp.eq.s32.totalorder %s15, 0
    %p47 = por %p45, %p46
    %p48 = scmp.ne.s32.totalorder %s37, %s40
    %p49 = scmp.eq.s32.totalorder %s20, 15
    %p50 = por %p48, %p49
    %p51 = scmp.ne.s32.totalorder %s40, %s41
    %p52 = scmp.eq.s32.totalorder %s20, 0
    %p53 = por %p51, %p52
    %p54 = scmp.ne.s32.totalorder %s40, %s41
    %p55 = scmp.eq.s32.totalorder %s21, 15
    %p56 = por %p54, %p55
    %p58 = scmp.ne.s32.totalorder %s41, %s57
    %p59 = scmp.eq.s32.totalorder %s21, 0
    %p60 = por %p58, %p59
    %s61 = ssub.s32 %s22, %s34
    %p62 = scmp.eq.s32.totalorder %s61, 0
    %s64 = sadd.s32 %s63, 1
    %s65 = scalar_select %p62, %s63, %s64
    %p68 = pneg %p62
    %p69 = scmp.eq.s32.totalorder %s15, 15
    %p70 = por %p68, %p69
    %p71 = scmp.ne.s32.totalorder %s63, %s66
    %p72 = scmp.eq.s32.totalorder %s15, 0
    %p73 = por %p71, %p72
    %p74 = scmp.ne.s32.totalorder %s63, %s66
    %p75 = scmp.eq.s32.totalorder %s20, 15
    %p76 = por %p74, %p75
    %p77 = scmp.ne.s32.totalorder %s66, %s67
    %p78 = scmp.eq.s32.totalorder %s20, 0
    %p79 = por %p77, %p78
    %p80 = scmp.ne.s32.totalorder %s66, %s67
    %p81 = scmp.eq.s32.totalorder %s21, 15
    %p82 = por %p80, %p81
    %p84 = scmp.ne.s32.totalorder %s67, %s83
    %p85 = scmp.eq.s32.totalorder %s21, 0
    %p86 = por %p84, %p85
    %s87 = ssub.s32 %s23, %s30
    %p88 = scmp.eq.s32.totalorder %s87, 0
    %s90 = sadd.s32 %s89, 1
    %s91 = scalar_select %p88, %s89, %s90
    %p94 = pneg %p88
    %p95 = scmp.eq.s32.totalorder %s15, 15
    %p96 = por %p94, %p95
    %p97 = scmp.ne.s32.totalorder %s89, %s92
    %p98 = scmp.eq.s32.totalorder %s15, 0
    %p99 = por %p97, %p98
    %p100 = scmp.ne.s32.totalorder %s89, %s92
    %p101 = scmp.eq.s32.totalorder %s20, 15
    %p102 = por %p100, %p101
    %p103 = scmp.ne.s32.totalorder %s92, %s93
    %p104 = scmp.eq.s32.totalorder %s20, 0
    %p105 = por %p103, %p104
    %p106 = scmp.ne.s32.totalorder %s92, %s93
    %p107 = scmp.eq.s32.totalorder %s21, 15
    %p108 = por %p106, %p107
    %p110 = scmp.ne.s32.totalorder %s93, %s109
    %p111 = scmp.eq.s32.totalorder %s21, 0
    %p112 = por %p110, %p111
    %s113 = ssub.s32 %s23, %s30
    %p114 = scmp.eq.s32.totalorder %s113, 0
    %s116 = sadd.s32 %s115, 1
    %s117 = scalar_select %p114, %s115, %s116
    %p120 = pneg %p114
    %p121 = scmp.eq.s32.totalorder %s15, 15
    %p122 = por %p120, %p121
    %p123 = scmp.ne.s32.totalorder %s115, %s118
    %p124 = scmp.eq.s32.totalorder %s15, 0
    %p125 = por %p123, %p124
    %p126 = scmp.ne.s32.totalorder %s115, %s118
    %p127 = scmp.eq.s32.totalorder %s20, 15
    %p128 = por %p126, %p127
    %p129 = scmp.ne.s32.totalorder %s118, %s119
    %p130 = scmp.eq.s32.totalorder %s20, 0
    %p131 = por %p129, %p130
    %p132 = scmp.ne.s32.totalorder %s118, %s119
    %p133 = scmp.eq.s32.totalorder %s21, 15
    %p134 = por %p132, %p133
    %p136 = scmp.ne.s32.totalorder %s119, %s135
    %p137 = scmp.eq.s32.totalorder %s21, 0
    %p138 = por %p136, %p137
    %s140 = sadd.s32 %s139, 1
    %p143 = scmp.eq.s32.totalorder %s15, 15
    %p144 = scmp.ne.s32.totalorder %s139, %s141
    %p145 = scmp.eq.s32.totalorder %s15, 0
    %p146 = por %p144, %p145
    %p147 = scmp.ne.s32.totalorder %s139, %s141
    %p148 = scmp.eq.s32.totalorder %s20, 15
    %p149 = por %p147, %p148
    %p150 = scmp.ne.s32.totalorder %s141, %s142
    %p151 = scmp.eq.s32.totalorder %s20, 0
    %p152 = por %p150, %p151
    %p153 = scmp.ne.s32.totalorder %s141, %s142
    %p154 = scmp.eq.s32.totalorder %s21, 15
    %p155 = por %p153, %p154
    %p157 = scmp.ne.s32.totalorder %s142, %s156
    %p158 = scmp.eq.s32.totalorder %s21, 0
    %p159 = por %p157, %p158
    %s160 = ssub.s32 %s22, %s34
    %s161 = ssub.s32 %s23, %s30
    %s162 = sor.u32 %s160, %s161
    %p163 = scmp.eq.s32.totalorder %s162, 0
    %s165 = sadd.s32 %s164, 1
    %s166 = scalar_select %p163, %s164, %s165
    %p169 = pneg %p163
    %p170 = scmp.eq.s32.totalorder %s15, 15
    %p171 = por %p169, %p170
    %p172 = scmp.ne.s32.totalorder %s164, %s167
    %p173 = scmp.eq.s32.totalorder %s15, 0
    %p174 = por %p172, %p173
    %p175 = scmp.ne.s32.totalorder %s164, %s167
    %p176 = scmp.eq.s32.totalorder %s20, 15
    %p177 = por %p175, %p176
    %p178 = scmp.ne.s32.totalorder %s167, %s168
    %p179 = scmp.eq.s32.totalorder %s20, 0
    %p180 = por %p178, %p179
    %p181 = scmp.ne.s32.totalorder %s167, %s168
    %p182 = scmp.eq.s32.totalorder %s21, 15
    %p183 = por %p181, %p182
    %p185 = scmp.ne.s32.totalorder %s168, %s184
    %p186 = scmp.eq.s32.totalorder %s21, 0
    %p187 = por %p185, %p186
    %s188 = ssub.s32 %s22, %s34
    %s189 = ssub.s32 %s23, %s30
    %s190 = sor.u32 %s188, %s189
    %p191 = scmp.eq.s32.totalorder %s190, 0
    %s193 = sadd.s32 %s192, 1
    %s194 = scalar_select %p191, %s192, %s193
    %p197 = pneg %p191
    %p198 = scmp.eq.s32.totalorder %s15, 15
    %p199 = por %p197, %p198
    %p200 = scmp.ne.s32.totalorder %s192, %s195
    %p201 = scmp.eq.s32.totalorder %s15, 0
    %p202 = por %p200, %p201
    %p203 = scmp.ne.s32.totalorder %s192, %s195
    %p204 = scmp.eq.s32.totalorder %s20, 15
    %p205 = por %p203, %p204
    %p206 = scmp.ne.s32.totalorder %s195, %s196
    %p207 = scmp.eq.s32.totalorder %s20, 0
    %p208 = por %p206, %p207
    %p209 = scmp.ne.s32.totalorder %s195, %s196
    %p210 = scmp.eq.s32.totalorder %s21, 15
    %p211 = por %p209, %p210
    %p213 = scmp.ne.s32.totalorder %s196, %s212
    %p214 = scmp.eq.s32.totalorder %s21, 0
    %p215 = por %p213, %p214
    %s216 = ssub.s32 %s22, %s34
    %s217 = ssub.s32 %s23, %s30
    %s218 = sor.u32 %s216, %s217
    %p219 = scmp.eq.s32.totalorder %s218, 0
    %s221 = sadd.s32 %s220, 1
    %s222 = scalar_select %p219, %s220, %s221
    %p225 = pneg %p219
    %p226 = scmp.eq.s32.totalorder %s15, 15
    %p227 = por %p225, %p226
    %p228 = scmp.ne.s32.totalorder %s220, %s223
    %p229 = scmp.eq.s32.totalorder %s15, 0
    %p230 = por %p228, %p229
    %p231 = scmp.ne.s32.totalorder %s220, %s223
    %p232 = scmp.eq.s32.totalorder %s20, 15
    %p233 = por %p231, %p232
    %p234 = scmp.ne.s32.totalorder %s223, %s224
    %p235 = scmp.eq.s32.totalorder %s20, 0
    %p236 = por %p234, %p235
    %p237 = scmp.ne.s32.totalorder %s223, %s224
    %p238 = scmp.eq.s32.totalorder %s21, 15
    %p239 = por %p237, %p238
    %p241 = scmp.ne.s32.totalorder %s224, %s240
    %p242 = scmp.eq.s32.totalorder %s21, 0
    %p243 = por %p241, %p242
    %s244 = ssub.s32 %s22, %s34
    %s245 = ssub.s32 %s23, %s30
    %s246 = sor.u32 %s244, %s245
    %p247 = scmp.eq.s32.totalorder %s246, 0
    %s249 = sadd.s32 %s248, 1
    %s250 = scalar_select %p247, %s248, %s249
    %p253 = pneg %p247
    %p254 = scmp.eq.s32.totalorder %s15, 15
    %p255 = por %p253, %p254
    %p256 = scmp.ne.s32.totalorder %s248, %s251
    %p257 = scmp.eq.s32.totalorder %s15, 0
    %p258 = por %p256, %p257
    %p259 = scmp.ne.s32.totalorder %s248, %s251
    %p260 = scmp.eq.s32.totalorder %s20, 15
    %p261 = por %p259, %p260
    %p262 = scmp.ne.s32.totalorder %s251, %s252
    %p263 = scmp.eq.s32.totalorder %s20, 0
    %p264 = por %p262, %p263
    %p265 = scmp.ne.s32.totalorder %s251, %s252
    %p266 = scmp.eq.s32.totalorder %s21, 15
    %p267 = por %p265, %p266
    %p269 = scmp.ne.s32.totalorder %s252, %s268
    %p270 = scmp.eq.s32.totalorder %s21, 0
    %p271 = por %p269, %p270
    %p272 = scmp.le.s32.totalorder 1, %s15
    %p273 = scmp.lt.s32.totalorder %s15, 17
    %p274 = pnand %p272, %p273
    %p275 = pneg %p274
    // Predicated region
    $region9: #{tpu_custom_call.1} parent=5 // pred_check
      _
    $region10: #{tpu_custom_call.1} parent=5 // pred_check_branch
      %277 = sbr.rel (%p274) target = $region12
    $region11: #{tpu_custom_call.1} parent=5 // pred_region
      %s278 = ssub.s32 %s15, 1
      // Predicated region
      $region13: #{tpu_custom_call.1} parent=11 // pred_check
        %p279 = pneg %p152
      $region14: #{tpu_custom_call.1} parent=11 // pred_check_branch
        %281 = sbr.rel (%p279) target = $region16
      $region15: #{tpu_custom_call.1} parent=11 // pred_region
        _
      $region16: #{tpu_custom_call.1} parent=11 // pred_fallthru
        _
    $region12: #{tpu_custom_call.1} parent=5 // pred_fallthru
      _
    %p282 = scmp.lt.s32.totalorder %s15, 16
    // Predicated region
    $region17: #{tpu_custom_call.1} parent=5 // pred_check
      %p283 = pneg %p282
    $region18: #{tpu_custom_call.1} parent=5 // pred_check_branch
      %285 = sbr.rel (%p283) target = $region20
    $region19: #{tpu_custom_call.1} parent=5 // pred_region
      // Predicated region
      $region21: #{tpu_custom_call.1} parent=19 // pred_check
        %p286 = pneg %p47
      $region22: #{tpu_custom_call.1} parent=19 // pred_check_branch
        %288 = sbr.rel (%p286) target = $region24
      $region23: #{tpu_custom_call.1} parent=19 // pred_region
        %p289 = scmp.lt.s32.totalorder %s22, 1
        %s290 = scalar_select %p289, %s22, 1
        %s291 = smul.addr %s290, 8
        %s292 = scalar_lea.vmem %s0, %s291
      $region24: #{tpu_custom_call.1} parent=19 // pred_fallthru
        _
      // Predicated region
      $region25: #{tpu_custom_call.1} parent=19 // pred_check
        %p293 = pneg %p73
      $region26: #{tpu_custom_call.1} parent=19 // pred_check_branch
        %295 = sbr.rel (%p293) target = $region28
      $region27: #{tpu_custom_call.1} parent=19 // pred_region
        %p296 = scmp.lt.s32.totalorder %s22, 1
        %s297 = scalar_select %p296, %s22, 1
        %s298 = smul.addr %s297, 8
        %s299 = scalar_lea.vmem %s1, %s298
      $region28: #{tpu_custom_call.1} parent=19 // pred_fallthru
        _
      // Predicated region
      $region29: #{tpu_custom_call.1} parent=19 // pred_check
        %p300 = pneg %p99
      $region30: #{tpu_custom_call.1} parent=19 // pred_check_branch
        %302 = sbr.rel (%p300) target = $region32
      $region31: #{tpu_custom_call.1} parent=19 // pred_region
        %p303 = scmp.lt.s32.totalorder %s23, 7
        %s304 = scalar_select %p303, %s23, 7
        %s305 = smul.addr %s304, 4
        %s306 = smul.addr %s305, 8
        %s307 = scalar_lea.vmem %s2, %s306
      $region32: #{tpu_custom_call.1} parent=19 // pred_fallthru
        _
      // Predicated region
      $region33: #{tpu_custom_call.1} parent=19 // pred_check
        %p308 = pneg %p125
      $region34: #{tpu_custom_call.1} parent=19 // pred_check_branch
        %310 = sbr.rel (%p308) target = $region36
      $region35: #{tpu_custom_call.1} parent=19 // pred_region
        %p311 = scmp.lt.s32.totalorder %s23, 7
        %s312 = scalar_select %p311, %s23, 7
        %s313 = scalar_lea.vmem %s3, %s312
      $region36: #{tpu_custom_call.1} parent=19 // pred_fallthru
        _
    $region20: #{tpu_custom_call.1} parent=5 // pred_fallthru
      _
    %p314 = scmp.le.s32.totalorder 1, %s15
    %p315 = scmp.lt.s32.totalorder %s15, 17
    %p316 = pnand %p314, %p315
    %p317 = pneg %p316
    // Predicated region
    $region37: #{tpu_custom_call.1} parent=5 // pred_check
      _
    $region38: #{tpu_custom_call.1} parent=5 // pred_check_branch
      %319 = sbr.rel (%p316) target = $region40
    $region39: #{tpu_custom_call.1} parent=5 // pred_region
      %s320 = ssub.s32 %s15, 1
      %p321 = scmp.lt.s32.totalorder %s24, 1
      %s322 = scalar_select %p321, %s24, 1
      %s323 = smul.addr %s322, 8
      %s324 = scalar_lea.vmem %s0, %s323
      %p325 = pneg %p53
      %p326 = pneg %p50
      %p327 = scmp.lt.s32.totalorder %s24, 1
      %s328 = scalar_select %p327, %s24, 1
      %s329 = smul.addr %s328, 8
      %s330 = scalar_lea.vmem %s1, %s329
      %p331 = pneg %p79
      %p332 = pneg %p76
      %p333 = scmp.lt.s32.totalorder %s25, 7
      %s334 = scalar_select %p333, %s25, 7
      %s335 = smul.addr %s334, 4
      %s336 = smul.addr %s335, 8
      %s337 = scalar_lea.vmem %s2, %s336
      %p338 = pneg %p105
      %p339 = pneg %p102
      %p340 = scmp.lt.s32.totalorder %s25, 7
      %s341 = scalar_select %p340, %s25, 7
      %s342 = scalar_lea.vmem %s3, %s341
      %p343 = pneg %p131
      %p344 = pneg %p128
      %p345 = pneg %p152
      %p346 = pneg %p149
      %p347 = pneg %p180
      %p348 = pneg %p177
      %p349 = scmp.lt.s32.totalorder %s24, 1
      %s350 = scalar_select %p349, %s24, 1
      %p351 = scmp.lt.s32.totalorder %s25, 7
      %s352 = scalar_select %p351, %s25, 7
      %s353 = smul.addr %s350, 8
      %s354 = sadd.s32 %s352, %s353
      %s355 = smul.addr %s354, 8
      %s356 = scalar_lea.vmem %s5, %s355
      %p357 = pneg %p208
      %p358 = pneg %p205
      %p359 = scmp.lt.s32.totalorder %s24, 1
      %s360 = scalar_select %p359, %s24, 1
      %p361 = scmp.lt.s32.totalorder %s25, 7
      %s362 = scalar_select %p361, %s25, 7
      %s363 = smul.addr %s360, 8
      %s364 = sadd.s32 %s362, %s363
      %s365 = smul.addr %s364, 8
      %s366 = scalar_lea.vmem %s6, %s365
      %p367 = pneg %p236
      %p368 = pneg %p233
      %p369 = scmp.lt.s32.totalorder %s24, 1
      %s370 = scalar_select %p369, %s24, 1
      %p371 = scmp.lt.s32.totalorder %s25, 7
      %s372 = scalar_select %p371, %s25, 7
      %s373 = smul.addr %s370, 8
      %s374 = sadd.s32 %s372, %s373
      %s375 = smul.addr %s374, 8
      %s376 = scalar_lea.vmem %s7, %s375
      %p377 = pneg %p264
      %p378 = pneg %p261
      %p379 = scmp.lt.s32.totalorder %s24, 1
      %s380 = scalar_select %p379, %s24, 1
      %p381 = scmp.lt.s32.totalorder %s25, 7
      %s382 = scalar_select %p381, %s25, 7
      %s383 = smul.addr %s380, 8
      %s384 = sadd.s32 %s382, %s383
      %s385 = smul.addr %s384, 8
      %s386 = scalar_lea.vmem %s8, %s385
      %p387 = scmp.lt.s32.totalorder %s24, 1
      %s388 = scalar_select %p387, %s24, 1
      %s389 = smul.addr %s388, 8
      %s390 = scalar_lea.vmem %s0, %s389
      %p391 = scmp.lt.s32.totalorder %s24, 1
      %s392 = scalar_select %p391, %s24, 1
      %s393 = smul.addr %s392, 8
      %s394 = scalar_lea.vmem %s1, %s393
      %p395 = scmp.lt.s32.totalorder %s25, 7
      %s396 = scalar_select %p395, %s25, 7
      %s397 = smul.addr %s396, 4
      %s398 = smul.addr %s397, 8
      %s399 = scalar_lea.vmem %s2, %s398
      %p400 = scmp.lt.s32.totalorder %s25, 7
      %s401 = scalar_select %p400, %s25, 7
      %s402 = scalar_lea.vmem %s3, %s401
      %p403 = scmp.lt.s32.totalorder %s24, 1
      %s404 = scalar_select %p403, %s24, 1
      %p405 = scmp.lt.s32.totalorder %s25, 7
      %s406 = scalar_select %p405, %s25, 7
      %s407 = smul.addr %s404, 8
      %s408 = sadd.s32 %s406, %s407
      %s409 = smul.addr %s408, 8
      %s410 = scalar_lea.vmem %s5, %s409
      %p411 = scmp.lt.s32.totalorder %s24, 1
      %s412 = scalar_select %p411, %s24, 1
      %p413 = scmp.lt.s32.totalorder %s25, 7
      %s414 = scalar_select %p413, %s25, 7
      %s415 = smul.addr %s412, 8
      %s416 = sadd.s32 %s414, %s415
      %s417 = smul.addr %s416, 8
      %s418 = scalar_lea.vmem %s6, %s417
      %p419 = scmp.lt.s32.totalorder %s24, 1
      %s420 = scalar_select %p419, %s24, 1
      %p421 = scmp.lt.s32.totalorder %s25, 7
      %s422 = scalar_select %p421, %s25, 7
      %s423 = smul.addr %s420, 8
      %s424 = sadd.s32 %s422, %s423
      %s425 = smul.addr %s424, 8
      %s426 = scalar_lea.vmem %s7, %s425
      %p427 = scmp.lt.s32.totalorder %s24, 1
      %s428 = scalar_select %p427, %s24, 1
      %p429 = scmp.lt.s32.totalorder %s25, 7
      %s430 = scalar_select %p429, %s25, 7
      %s431 = smul.addr %s428, 8
      %s432 = sadd.s32 %s430, %s431
      %s433 = smul.addr %s432, 8
      %s434 = scalar_lea.vmem %s8, %s433
      %v435 = vld [vmem:[%s390] sm:$0xff]
      %v436 = vld [vmem:[%s399] sm:$0xff]
      %v437 = vld [vmem:[%s399 + $0x8] sm:$0xff]
      %v438 = vld [vmem:[%s399 + $0x10] sm:$0xff]
      %v439 = vld [vmem:[%s399 + $0x18] sm:$0xff]
      %v440 = vld [vmem:[%s394] sm:$0xff]
      %v441 = vld [vmem:[%s4] sm:$0x3f]
      %vm442 = vcmask 48128
      %v444 = vsel %vm442, %v440, 0
      %vm446 = vcmask 1045504
      %v448 = vsel %vm446, %v441, 0
      %450 = vmatpush.msra.mxu0 0.0
      %451 = vmatpush.msra.mxu0 0.0
      %452 = vmatpush.msra.mxu0 0.0
      %453 = vmatpush.msra.mxu0 0.0
      %454 = vmatpush.msra.mxu0 0.0
      %455 = vmatpush.msra.mxu0 0.0
      %456 = vmatpush.msra.mxu0 0.0
      %457 = vmatpush.msra.mxu0 0.0
      %458 = vmatpush.msra.mxu0 0.0
      %459 = vmatpush.msra.mxu0 0.0
      %460 = vmatpush.msra.mxu0 0.0
      %461 = vmatpush.msra.mxu0 0.0
      %462 = vmatpush.msra.mxu0 0.0
      %463 = vmatpush.msra.mxu0 0.0
      %464 = vmatpush.msra.mxu0 0.0
      %465 = vmatpush.msra.mxu0 %v448
      %466 = vmatmul.f32.gmra.mxu0 %v444
      %v467 = vpop.f32.mrf.mxu0
      %v468 = vadd.f32 0.0, %v467
      %469 = vdwg.mxu0
      %vm470 = vcmask 261120
      %v472 = vsel %vm470, %v435, 0
      %474 = vmatpush.msra.mxu0 0.0
      %475 = vmatpush.msra.mxu0 0.0
      %476 = vmatpush.msra.mxu0 0.0
      %477 = vmatpush.msra.mxu0 0.0
      %478 = vmatpush.msra.mxu0 0.0
      %479 = vmatpush.msra.mxu0 0.0
      %480 = vmatpush.msra.mxu0 0.0
      %481 = vmatpush.msra.mxu0 0.0
      %482 = vmatpush.msra.mxu0 0.0
      %483 = vmatpush.msra.mxu0 0.0
      %484 = vmatpush.msra.mxu0 0.0
      %485 = vmatpush.msra.mxu0 0.0
      %486 = vmatpush.msra.mxu0 %v439
      %487 = vmatpush.msra.mxu0 %v438
      %488 = vmatpush.msra.mxu0 %v437
      %489 = vmatpush.msra.mxu0 %v436
      %490 = vmatmul.f32.gmra.mxu0 %v472
      %v491 = vpop.f32.mrf.mxu0
      %v492 = vadd.f32 %v468, %v491
      %493 = vdwg.mxu0
      %v494 = vld [vmem:[%s402] sm:$0x1]
      %v496 = vperm.slane %v494, 0
      %v498 = vadd.f32 %v492, %v496
      %vm499 = vcmask 31744
      %500 = vst.msk [vmem:[%s410] sm:$0xff] %vm499, %v498
      %502 = vrot.lane.b32.xlu0 %v498, 124
      %v503 = vpop.permute.xlu0 %502
      %505 = vst.msk [vmem:[%s418] sm:$0xff] %vm499, %v503
      %506 = vrot.lane.b32.xlu0 %v498, 120
      %v507 = vpop.permute.xlu0 %506
      %509 = vst.msk [vmem:[%s426] sm:$0xff] %vm499, %v507
      %vm510 = vcmask 130144
      %v511 = vsel %vm510, %v498, -inf
      %512 = vmax.xlane.f32.xlu0 %v511
      %v513 = vpop.xlane.xlu0 %512
      %v514 = vsub.f32 %v498, %v513
      %v515 = vmul.f32 %v514, 1.442695
      %v516 = vpow.pop %v515
      %518 = vrot.lane.b32.xlu0 %v516, 116
      %v519 = vpop.permute.xlu0 %518
      %v521 = vsel %vm499, %v519, 0.0
      %522 = vadd.xlane.f32.xlu0 %v521
      %v523 = vpop.xlane.xlu0 %522
      %v524 = vrcp.pop %v523
      %v525 = vmul.f32 %v523, %v524
      %v526 = vsub.f32 2.0, %v525
      %v527 = vmul.f32 %v524, %v526
      %v528 = vmul.f32 %v516, %v527
      %530 = vrot.lane.b32.xlu0 %v528, 116
      %v531 = vpop.permute.xlu0 %530
      %533 = vst.msk [vmem:[%s434] sm:$0xff] %vm499, %v531
      %p534 = scmp.lt.s32.totalorder %s24, 1
      %s535 = scalar_select %p534, %s24, 1
      %p536 = scmp.lt.s32.totalorder %s25, 7
      %s537 = scalar_select %p536, %s25, 7
      %s538 = smul.addr %s535, 8
      %s539 = sadd.s32 %s537, %s538
      %s540 = smul.addr %s539, 8
      %s541 = scalar_lea.vmem %s5, %s540
      %p542 = scmp.lt.s32.totalorder %s24, 1
      %s543 = scalar_select %p542, %s24, 1
      %p544 = scmp.lt.s32.totalorder %s25, 7
      %s545 = scalar_select %p544, %s25, 7
      %s546 = smul.addr %s543, 8
      %s547 = sadd.s32 %s545, %s546
      %s548 = smul.addr %s547, 8
      %s549 = scalar_lea.vmem %s6, %s548
      %p550 = scmp.lt.s32.totalorder %s24, 1
      %s551 = scalar_select %p550, %s24, 1
      %p552 = scmp.lt.s32.totalorder %s25, 7
      %s553 = scalar_select %p552, %s25, 7
      %s554 = smul.addr %s551, 8
      %s555 = sadd.s32 %s553, %s554
      %s556 = smul.addr %s555, 8
      %s557 = scalar_lea.vmem %s7, %s556
      %p558 = scmp.lt.s32.totalorder %s24, 1
      %s559 = scalar_select %p558, %s24, 1
      %p560 = scmp.lt.s32.totalorder %s25, 7
      %s561 = scalar_select %p560, %s25, 7
      %s562 = smul.addr %s559, 8
      %s563 = sadd.s32 %s561, %s562
      %s564 = smul.addr %s563, 8
      %s565 = scalar_lea.vmem %s8, %s564
      // Predicated region
      $region41: #{tpu_custom_call.1} parent=39 // pred_check
        %p566 = pneg %p177
      $region42: #{tpu_custom_call.1} parent=39 // pred_check_branch
        %568 = sbr.rel (%p566) target = $region44
      $region43: #{tpu_custom_call.1} parent=39 // pred_region
        _
      $region44: #{tpu_custom_call.1} parent=39 // pred_fallthru
        _
      // Predicated region
      $region45: #{tpu_custom_call.1} parent=39 // pred_check
        %p569 = pneg %p205
      $region46: #{tpu_custom_call.1} parent=39 // pred_check_branch
        %571 = sbr.rel (%p569) target = $region48
      $region47: #{tpu_custom_call.1} parent=39 // pred_region
        _
      $region48: #{tpu_custom_call.1} parent=39 // pred_fallthru
        _
      // Predicated region
      $region49: #{tpu_custom_call.1} parent=39 // pred_check
        %p572 = pneg %p233
      $region50: #{tpu_custom_call.1} parent=39 // pred_check_branch
        %574 = sbr.rel (%p572) target = $region52
      $region51: #{tpu_custom_call.1} parent=39 // pred_region
        _
      $region52: #{tpu_custom_call.1} parent=39 // pred_fallthru
        _
      // Predicated region
      $region53: #{tpu_custom_call.1} parent=39 // pred_check
        %p575 = pneg %p261
      $region54: #{tpu_custom_call.1} parent=39 // pred_check_branch
        %577 = sbr.rel (%p575) target = $region56
      $region55: #{tpu_custom_call.1} parent=39 // pred_region
        _
      $region56: #{tpu_custom_call.1} parent=39 // pred_fallthru
        _
    $region40: #{tpu_custom_call.1} parent=5 // pred_fallthru
      _
    %p578 = scmp.le.s32.totalorder 2, %s15
    // Predicated region
    $region57: #{tpu_custom_call.1} parent=5 // pred_check
      %p579 = pneg %p578
    $region58: #{tpu_custom_call.1} parent=5 // pred_check_branch
      %581 = sbr.rel (%p579) target = $region60
    $region59: #{tpu_custom_call.1} parent=5 // pred_region
      %s582 = ssub.s32 %s15, 2
      // Predicated region
      $region61: #{tpu_custom_call.1} parent=59 // pred_check
        %p583 = pneg %p183
      $region62: #{tpu_custom_call.1} parent=59 // pred_check_branch
        %585 = sbr.rel (%p583) target = $region64
      $region63: #{tpu_custom_call.1} parent=59 // pred_region
        %p586 = scmp.lt.s32.totalorder %s26, 1
        %s587 = scalar_select %p586, %s26, 1
        %p588 = scmp.lt.s32.totalorder %s27, 7
        %s589 = scalar_select %p588, %s27, 7
        %s590 = smul.addr %s587, 8
        %s591 = sadd.s32 %s589, %s590
        %s592 = smul.addr %s591, 8
        %s593 = scalar_lea.vmem %s5, %s592
      $region64: #{tpu_custom_call.1} parent=59 // pred_fallthru
        _
      // Predicated region
      $region65: #{tpu_custom_call.1} parent=59 // pred_check
        %p594 = pneg %p211
      $region66: #{tpu_custom_call.1} parent=59 // pred_check_branch
        %596 = sbr.rel (%p594) target = $region68
      $region67: #{tpu_custom_call.1} parent=59 // pred_region
        %p597 = scmp.lt.s32.totalorder %s26, 1
        %s598 = scalar_select %p597, %s26, 1
        %p599 = scmp.lt.s32.totalorder %s27, 7
        %s600 = scalar_select %p599, %s27, 7
        %s601 = smul.addr %s598, 8
        %s602 = sadd.s32 %s600, %s601
        %s603 = smul.addr %s602, 8
        %s604 = scalar_lea.vmem %s6, %s603
      $region68: #{tpu_custom_call.1} parent=59 // pred_fallthru
        _
      // Predicated region
      $region69: #{tpu_custom_call.1} parent=59 // pred_check
        %p605 = pneg %p239
      $region70: #{tpu_custom_call.1} parent=59 // pred_check_branch
        %607 = sbr.rel (%p605) target = $region72
      $region71: #{tpu_custom_call.1} parent=59 // pred_region
        %p608 = scmp.lt.s32.totalorder %s26, 1
        %s609 = scalar_select %p608, %s26, 1
        %p610 = scmp.lt.s32.totalorder %s27, 7
        %s611 = scalar_select %p610, %s27, 7
        %s612 = smul.addr %s609, 8
        %s613 = sadd.s32 %s611, %s612
        %s614 = smul.addr %s613, 8
        %s615 = scalar_lea.vmem %s7, %s614
      $region72: #{tpu_custom_call.1} parent=59 // pred_fallthru
        _
      // Predicated region
      $region73: #{tpu_custom_call.1} parent=59 // pred_check
        %p616 = pneg %p267
      $region74: #{tpu_custom_call.1} parent=59 // pred_check_branch
        %618 = sbr.rel (%p616) target = $region76
      $region75: #{tpu_custom_call.1} parent=59 // pred_region
        %p619 = scmp.lt.s32.totalorder %s26, 1
        %s620 = scalar_select %p619, %s26, 1
        %p621 = scmp.lt.s32.totalorder %s27, 7
        %s622 = scalar_select %p621, %s27, 7
        %s623 = smul.addr %s620, 8
        %s624 = sadd.s32 %s622, %s623
        %s625 = smul.addr %s624, 8
        %s626 = scalar_lea.vmem %s8, %s625
      $region76: #{tpu_custom_call.1} parent=59 // pred_fallthru
        _
    $region60: #{tpu_custom_call.1} parent=5 // pred_fallthru
      _
  $region6: #{tpu_custom_call.1} parent=0 // loop_footer
    %s19 = sadd.s32 1, %s15
  $region7: #{tpu_custom_call.1} parent=0 // loop_footer_branch
    %14 = sbr.rel target = $region3
  $region8: #{tpu_custom_call.1} parent=0 // loop_exit
    _

</llo_original>
